<compile_context>
chip_gen: v7x
topology: tpu7x:2x2x1
jax: 0.10.0
libtpu: 0.0.40
codegen_flags: <defaults>
</compile_context>

<pallas_src>
import jax
import jax.numpy as jnp
from jax.experimental import pallas as pl
from jax.experimental.pallas import tpu as pltpu


def _round_up(n, m):
    return ((n + m - 1) // m) * m


def dueling_net2_kernel(x_ref, w1_ref, b1_ref, w2_ref, b2_ref, w3_ref, b3_ref,
                        out_ref):
    # fc1 + ReLU: (TB, S) @ (S, 128) -> lane-aligned (TB, 128) hidden.
    h = jnp.dot(x_ref[...], w1_ref[...], preferred_element_type=jnp.float32)
    h = jnp.maximum(h + b1_ref[...], 0.0)

    # Advantage head: (TB, 128) @ (128, 128) -> lane-dense (TB, 128) output tile
    # (only the first N_ACTIONS columns are real; the rest are sliced off in
    # the wrapper).
    a = jnp.dot(h, w2_ref[...], preferred_element_type=jnp.float32) + b2_ref[...]

    # Value head: (TB, 128) @ (128, 1) -> (TB, 1).
    v = jnp.dot(h, w3_ref[...], preferred_element_type=jnp.float32) + b3_ref[...]

    # Dueling aggregation exactly as in the module: Q = A + V (broadcast).
    out_ref[...] = (a + v).astype(out_ref.dtype)


def dueling_net2_forward(x, w1_t, b1, w2_t, b2, w3_t, b3, *, block_b=None):
    """x: (B, N_STATES); w1_t: (N_STATES, 100); b1: (1, 100);
       w2_t: (100, N_ACTIONS); b2: (1, N_ACTIONS);
       w3_t: (100, 1);          b3: (1, 1).
       Returns (B, N_ACTIONS) Q-values."""
    B, S = x.shape
    H = w1_t.shape[1]
    A = w2_t.shape[1]

    H_PAD = _round_up(H, 128)          # 100 -> 128 : lane-aligned hidden
    A_PAD = _round_up(max(A, 1), 128)  # 4   -> 128 : lane-dense output stores

    # Batch tile: multiple of 8 (f32 sublanes); 256 rows at training-batch
    # sizes keeps the MXU fed on 256-wide passes (v6e/v7x) while the per-step
    # VMEM footprint stays small (x tile + out tile + resident weights << 1 MiB).
    if block_b is None:
        block_b = 256 if B >= 256 else _round_up(B, 8)
    PB = _round_up(B, block_b)

    f32 = jnp.float32
    x_p = jnp.zeros((PB, S), f32).at[:B, :].set(x.astype(f32))
    w1_p = jnp.zeros((S, H_PAD), f32).at[:, :H].set(w1_t.astype(f32))
    b1_p = jnp.zeros((1, H_PAD), f32).at[:, :H].set(b1.astype(f32))
    w2_p = jnp.zeros((H_PAD, A_PAD), f32).at[:H, :A].set(w2_t.astype(f32))
    b2_p = jnp.zeros((1, A_PAD), f32).at[:, :A].set(b2.astype(f32))
    w3_p = jnp.zeros((H_PAD, 1), f32).at[:H, :].set(w3_t.astype(f32))
    b3_p = b3.reshape(1, 1).astype(f32)

    grid = (PB // block_b,)
    resident = lambda i: (0, 0)  # weights/biases stay pinned in VMEM across steps

    out_padded = pl.pallas_call(
        dueling_net2_kernel,
        out_shape=jax.ShapeDtypeStruct((PB, A_PAD), f32),
        grid=grid,
        in_specs=[
            pl.BlockSpec((block_b, S), lambda i: (i, 0)),   # x: streamed over batch
            pl.BlockSpec((S, H_PAD), resident),             # fc1 weight (transposed)
            pl.BlockSpec((1, H_PAD), resident),             # fc1 bias
            pl.BlockSpec((H_PAD, A_PAD), resident),         # out weight (transposed)
            pl.BlockSpec((1, A_PAD), resident),             # out bias
            pl.BlockSpec((H_PAD, 1), resident),             # out_2 weight (transposed)
            pl.BlockSpec((1, 1), resident),                 # out_2 bias
        ],
        out_specs=pl.BlockSpec((block_b, A_PAD), lambda i: (i, 0)),
        compiler_params=pltpu.CompilerParams(
            dimension_semantics=("parallel",)),
    )(x_p, w1_p, b1_p, w2_p, b2_p, w3_p, b3_p)

    # Strip batch and action padding (free layout plumbing in the wrapper).
    return out_padded[:B, :A]


if __name__ == "__main__":
    # Small shapes consistent with the module: batch=2, N_STATES=8,
    # hidden=100, N_ACTIONS=4.
    B, N_STATES, HIDDEN, N_ACTIONS = 2, 8, 100, 4

    key = jax.random.PRNGKey(0)
    kx, kw1, kb1, kw2, kb2, kw3, kb3 = jax.random.split(key, 7)

    x = jax.random.normal(kx, (B, N_STATES), dtype=jnp.float32)

    # fc1.weight ~ N(0, 0.1), shape (100, N_STATES) in torch; pass transposed.
    w1 = 0.1 * jax.random.normal(kw1, (HIDDEN, N_STATES), dtype=jnp.float32)
    b1 = jax.random.uniform(kb1, (1, HIDDEN), dtype=jnp.float32,
                            minval=-1.0 / jnp.sqrt(N_STATES),
                            maxval=1.0 / jnp.sqrt(N_STATES))
    # out.weight ~ N(0, 0.1), shape (N_ACTIONS, 100) in torch; pass transposed.
    w2 = 0.1 * jax.random.normal(kw2, (N_ACTIONS, HIDDEN), dtype=jnp.float32)
    b2 = jax.random.uniform(kb2, (1, N_ACTIONS), dtype=jnp.float32,
                            minval=-1.0 / jnp.sqrt(HIDDEN),
                            maxval=1.0 / jnp.sqrt(HIDDEN))
    # out_2.weight ~ N(0, 0.1), shape (1, 100) in torch; pass transposed.
    w3 = 0.1 * jax.random.normal(kw3, (1, HIDDEN), dtype=jnp.float32)
    b3 = jax.random.uniform(kb3, (1, 1), dtype=jnp.float32,
                            minval=-1.0 / jnp.sqrt(HIDDEN),
                            maxval=1.0 / jnp.sqrt(HIDDEN))

    out = dueling_net2_forward(x, w1.T, b1, w2.T, b2, w3.T, b3)
    jax.block_until_ready(out)

    # Pure-JAX reference matching the PyTorch module's forward.
    h = jnp.maximum(x @ w1.T + b1, 0.0)
    ref = (h @ w2.T + b2) + (h @ w3.T + b3)

    assert out.shape == (B, N_ACTIONS)
    assert jnp.allclose(out, ref, atol=1e-5, rtol=1e-5)

    print("KERNEL_OK")
</pallas_src>

<mosaic_0001>
module attributes {stable_mosaic.version = 11 : i64} {
  func.func @dueling_net2_kernel(%arg0: i32, %arg1: memref<8x8xf32, #tpu.memory_space<vmem>>, %arg2: memref<8x128xf32, #tpu.memory_space<vmem>>, %arg3: memref<1x128xf32, #tpu.memory_space<vmem>>, %arg4: memref<128x128xf32, #tpu.memory_space<vmem>>, %arg5: memref<1x128xf32, #tpu.memory_space<vmem>>, %arg6: memref<128x1xf32, #tpu.memory_space<vmem>>, %arg7: memref<1x1xf32, #tpu.memory_space<vmem>>, %arg8: memref<8x128xf32, #tpu.memory_space<vmem>>) attributes {dimension_semantics = [#tpu.dimension_semantics<parallel>], iteration_bounds = array<i64: 1>, scalar_prefetch = 0 : i64, scratch_operands = 0 : i64, tpu.core_type = #tpu.core_type<tc>, window_params = [{transform_indices = @transform_0, window_bounds = array<i64: 8, 8>}, {pipeline_mode = #tpu.pipeline_mode<synchronous>, transform_indices = @transform_1, window_bounds = array<i64: 8, 128>}, {pipeline_mode = #tpu.pipeline_mode<synchronous>, transform_indices = @transform_2, window_bounds = array<i64: 1, 128>}, {pipeline_mode = #tpu.pipeline_mode<synchronous>, transform_indices = @transform_3, window_bounds = array<i64: 128, 128>}, {pipeline_mode = #tpu.pipeline_mode<synchronous>, transform_indices = @transform_4, window_bounds = array<i64: 1, 128>}, {pipeline_mode = #tpu.pipeline_mode<synchronous>, transform_indices = @transform_5, window_bounds = array<i64: 128, 1>}, {pipeline_mode = #tpu.pipeline_mode<synchronous>, transform_indices = @transform_6, window_bounds = array<i64: 1, 1>}, {transform_indices = @transform_7, window_bounds = array<i64: 8, 128>}]} {
    %c0 = arith.constant 0 : index
    %c0_0 = arith.constant 0 : index
    %0 = vector.load %arg1[%c0, %c0_0] : memref<8x8xf32, #tpu.memory_space<vmem>>, vector<8x8xf32>
    %c0_1 = arith.constant 0 : index
    %c0_2 = arith.constant 0 : index
    %1 = vector.load %arg2[%c0_1, %c0_2] : memref<8x128xf32, #tpu.memory_space<vmem>>, vector<8x128xf32>
    %cst = arith.constant dense<0.000000e+00> : vector<8x128xf32>
    %2 = tpu.matmul %0, %1, %cst {dimension_numbers = #tpu.dot_dimension_numbers<[1], [0], [0], [1], [0, 0, 1, 1], [], []>} : vector<8x8xf32>, vector<8x128xf32>, vector<8x128xf32> -> vector<8x128xf32>
    %c0_3 = arith.constant 0 : index
    %c0_4 = arith.constant 0 : index
    %3 = vector.load %arg3[%c0_3, %c0_4] : memref<1x128xf32, #tpu.memory_space<vmem>>, vector<1x128xf32>
    %4 = vector.broadcast %3 : vector<1x128xf32> to vector<8x128xf32>
    %5 = arith.addf %2, %4 : vector<8x128xf32>
    %cst_5 = arith.constant 0.000000e+00 : f32
    %6 = vector.broadcast %cst_5 : f32 to vector<8x128xf32>
    %7 = arith.maximumf %5, %6 : vector<8x128xf32>
    %c0_6 = arith.constant 0 : index
    %c0_7 = arith.constant 0 : index
    %8 = vector.load %arg4[%c0_6, %c0_7] : memref<128x128xf32, #tpu.memory_space<vmem>>, vector<128x128xf32>
    %cst_8 = arith.constant dense<0.000000e+00> : vector<8x128xf32>
    %9 = tpu.matmul %7, %8, %cst_8 {dimension_numbers = #tpu.dot_dimension_numbers<[1], [0], [0], [1], [0, 0, 1, 1], [], []>} : vector<8x128xf32>, vector<128x128xf32>, vector<8x128xf32> -> vector<8x128xf32>
    %c0_9 = arith.constant 0 : index
    %c0_10 = arith.constant 0 : index
    %10 = vector.load %arg5[%c0_9, %c0_10] : memref<1x128xf32, #tpu.memory_space<vmem>>, vector<1x128xf32>
    %11 = vector.broadcast %10 : vector<1x128xf32> to vector<8x128xf32>
    %12 = arith.addf %9, %11 : vector<8x128xf32>
    %c0_11 = arith.constant 0 : index
    %c0_12 = arith.constant 0 : index
    %13 = vector.load %arg6[%c0_11, %c0_12] : memref<128x1xf32, #tpu.memory_space<vmem>>, vector<128x1xf32>
    %cst_13 = arith.constant dense<0.000000e+00> : vector<8x1xf32>
    %14 = tpu.matmul %7, %13, %cst_13 {dimension_numbers = #tpu.dot_dimension_numbers<[1], [0], [0], [1], [0, 0, 1, 1], [], []>} : vector<8x128xf32>, vector<128x1xf32>, vector<8x1xf32> -> vector<8x1xf32>
    %c0_14 = arith.constant 0 : index
    %c0_15 = arith.constant 0 : index
    %15 = vector.load %arg7[%c0_14, %c0_15] : memref<1x1xf32, #tpu.memory_space<vmem>>, vector<1x1xf32>
    %16 = vector.broadcast %15 : vector<1x1xf32> to vector<8x1xf32>
    %17 = arith.addf %14, %16 : vector<8x1xf32>
    %18 = vector.broadcast %17 : vector<8x1xf32> to vector<8x128xf32>
    %19 = arith.addf %12, %18 : vector<8x128xf32>
    %c0_16 = arith.constant 0 : index
    %c0_17 = arith.constant 0 : index
    %20 = vector.load %arg8[%c0_16, %c0_17] : memref<8x128xf32, #tpu.memory_space<vmem>>, vector<8x128xf32>
    tpu.vector_store %arg8[%c0_16, %c0_17], %19 {strides = array<i32>} : memref<8x128xf32, #tpu.memory_space<vmem>>, vector<8x128xf32>,
    return
  }
  func.func @transform_0(%arg0: i32) -> (i32, i32) {
    %c0_i32 = arith.constant 0 : i32
    %c0_i32_0 = arith.constant 0 : i32
    return %arg0, %c0_i32 : i32, i32
  }
  func.func @transform_1(%arg0: i32) -> (i32, i32) {
    %c0_i32 = arith.constant 0 : i32
    %c0_i32_0 = arith.constant 0 : i32
    %c0_i32_1 = arith.constant 0 : i32
    return %c0_i32, %c0_i32_0 : i32, i32
  }
  func.func @transform_2(%arg0: i32) -> (i32, i32) {
    %c0_i32 = arith.constant 0 : i32
    %c0_i32_0 = arith.constant 0 : i32
    %c0_i32_1 = arith.constant 0 : i32
    return %c0_i32, %c0_i32_0 : i32, i32
  }
  func.func @transform_3(%arg0: i32) -> (i32, i32) {
    %c0_i32 = arith.constant 0 : i32
    %c0_i32_0 = arith.constant 0 : i32
    %c0_i32_1 = arith.constant 0 : i32
    return %c0_i32, %c0_i32_0 : i32, i32
  }
  func.func @transform_4(%arg0: i32) -> (i32, i32) {
    %c0_i32 = arith.constant 0 : i32
    %c0_i32_0 = arith.constant 0 : i32
    %c0_i32_1 = arith.constant 0 : i32
    return %c0_i32, %c0_i32_0 : i32, i32
  }
  func.func @transform_5(%arg0: i32) -> (i32, i32) {
    %c0_i32 = arith.constant 0 : i32
    %c0_i32_0 = arith.constant 0 : i32
    %c0_i32_1 = arith.constant 0 : i32
    return %c0_i32, %c0_i32_0 : i32, i32
  }
  func.func @transform_6(%arg0: i32) -> (i32, i32) {
    %c0_i32 = arith.constant 0 : i32
    %c0_i32_0 = arith.constant 0 : i32
    %c0_i32_1 = arith.constant 0 : i32
    return %c0_i32, %c0_i32_0 : i32, i32
  }
  func.func @transform_7(%arg0: i32) -> (i32, i32) {
    %c0_i32 = arith.constant 0 : i32
    %c0_i32_0 = arith.constant 0 : i32
    return %arg0, %c0_i32 : i32, i32
  }
}

</mosaic_0001>

<llo_original>
// kernel: tpu_custom_call.1
$region0: #{tpu_custom_call.1}
  #allocation0 [shape = 'u32[]', space=smem, size = 0x4, offset = 0x4, fixed_abs, tag = 'smem constant byte address 0x4 - core index']
  #allocation1 [shape = 'u32[144,128]{1,0:T(1,128)}', space=vmem, size = 0x12000, scoped, tag = 'internal scratch']
  #allocation2 [shape = 'f32[1,1]{1,0:T(1,128)S(1)}', space=vmem, size = 0x200, scoped, tag = 'scoped memory for tpu_custom_call.1']
  %s0 = inlined_call_operand.vmem [shape: f32[8,8], index: 0, kind: input, shape index: {}]
  %s1 = inlined_call_operand.vmem [shape: f32[8,128], index: 1, kind: input, shape index: {}]
  %s2 = inlined_call_operand.hbm [shape: f32[1,128], index: 2, kind: input, shape index: {}]
  %s3 = inlined_call_operand.vmem [shape: f32[128,128], index: 3, kind: input, shape index: {}]
  %s4 = inlined_call_operand.vmem [shape: f32[1,128], index: 4, kind: input, shape index: {}]
  %s5 = inlined_call_operand.vmem [shape: f32[128,1], index: 5, kind: input, shape index: {}]
  %s6 = inlined_call_operand.<no memory space> [shape: f32[1,1], index: 6, kind: input, shape index: {}]
  %s7 = inlined_call_operand.hbm [shape: f32[8,128], index: 7, kind: output, shape index: {}]
  %s8 = sld [smem:[#allocation0]]
  $region42: #{tpu_custom_call.1} parent=0
    _
  %s10 = ssub.s32 1, %s8
  %s11 = scalar_select 0, %s10, %s8
  %v12 = vstv %s6
  %13 = vst [vmem:[#allocation2] sm:$0x1] %v12
  $region1: #{tpu_custom_call.1} parent=0
    #allocation3 [shape = 'u8[512]{0}', space=vmem, size = 0x400, scoped, tag = 'input window, operand 2, single buffered']
    #allocation4 [shape = 's32[1]{0}', space=sflag, size = 0x4, scoped, tag = 'scoped memory for tpu_custom_call.1']
    #allocation5 [shape = 's32[1]{0}', space=sflag, size = 0x4, scoped, tag = 'scoped memory for tpu_custom_call.1']
    #allocation6 [shape = 'u8[4096]{0}', space=vmem, size = 0x1000, scoped, tag = 'output window, operand 0, single buffered']
    %14 = vsyncpa [#allocation4], 0
    %15 = vsyncpa [#allocation5], 0
    // Predicated region
    $region2: #{tpu_custom_call.1} parent=1 // pred_check
      _
    $region3: #{tpu_custom_call.1} parent=1 // pred_check_branch
      %17 = sbr.rel (0) target = $region5
    $region4: #{tpu_custom_call.1} parent=1 // pred_region
      _
    $region5: #{tpu_custom_call.1} parent=1 // pred_fallthru
      _
    // Predicated region
    $region6: #{tpu_custom_call.1} parent=1 // pred_check
      _
    $region7: #{tpu_custom_call.1} parent=1 // pred_check_branch
      %19 = sbr.rel (0) target = $region9
    $region8: #{tpu_custom_call.1} parent=1 // pred_region
      _
    $region9: #{tpu_custom_call.1} parent=1 // pred_fallthru
      _
    // Predicated region
    $region10: #{tpu_custom_call.1} parent=1 // pred_check
      _
    $region11: #{tpu_custom_call.1} parent=1 // pred_check_branch
      %21 = sbr.rel (0) target = $region13
    $region12: #{tpu_custom_call.1} parent=1 // pred_region
      %s23 = ssub.s32 16, 16
      %24 = vsyncadd [#allocation4], %s23
      %s26 = sshll.u32 [#allocation3], 4
      %s27 = int_to_ptr.vmem [resolvable:$true] %s26
      %29 = dma.hbm_to_vmem [thread:$0]  %s2, 16, %s27, [#allocation4]
    $region13: #{tpu_custom_call.1} parent=1 // pred_fallthru
      _
    // Predicated region
    $region14: #{tpu_custom_call.1} parent=1 // pred_check
      _
    $region15: #{tpu_custom_call.1} parent=1 // pred_check_branch
      %31 = sbr.rel (0) target = $region17
    $region16: #{tpu_custom_call.1} parent=1 // pred_region
      _
    $region17: #{tpu_custom_call.1} parent=1 // pred_fallthru
      _
    // Predicated region
    $region18: #{tpu_custom_call.1} parent=1 // pred_check
      _
    $region19: #{tpu_custom_call.1} parent=1 // pred_check_branch
      %33 = sbr.rel (0) target = $region21
    $region20: #{tpu_custom_call.1} parent=1 // pred_region
      _
    $region21: #{tpu_custom_call.1} parent=1 // pred_fallthru
      _
    // Predicated region
    $region22: #{tpu_custom_call.1} parent=1 // pred_check
      _
    $region23: #{tpu_custom_call.1} parent=1 // pred_check_branch
      %35 = sbr.rel (0) target = $region25
    $region24: #{tpu_custom_call.1} parent=1 // pred_region
      _
    $region25: #{tpu_custom_call.1} parent=1 // pred_fallthru
      _
    // Predicated region
    $region26: #{tpu_custom_call.1} parent=1 // pred_check
      _
    $region27: #{tpu_custom_call.1} parent=1 // pred_check_branch
      %37 = sbr.rel (0) target = $region29
    $region28: #{tpu_custom_call.1} parent=1 // pred_region
      _
    $region29: #{tpu_custom_call.1} parent=1 // pred_fallthru
      _
    // Predicated region
    $region30: #{tpu_custom_call.1} parent=1 // pred_check
      _
    $region31: #{tpu_custom_call.1} parent=1 // pred_check_branch
      %39 = sbr.rel (0) target = $region33
    $region32: #{tpu_custom_call.1} parent=1 // pred_region
      %40 = dma.done [#allocation4], 16
    $region33: #{tpu_custom_call.1} parent=1 // pred_fallthru
      _
    %v41 = vld [vmem:[%s0] sm:$0xff]
    %v42 = vld [vmem:[%s1] sm:$0xff]
    %v43 = vld [vmem:[#allocation3] sm:$0x1]
    %v45 = vlaneseq
    %v46 = vshrl.u32 %v45, 7
    %v47 = vsub.s32 0, %v46
    %v48 = vrot.slane %v43, %v47
    %vm50 = vcmask 64512
    %v52 = vsel %vm50, %v41, 0
    %54 = vmatprep.subr.mxu0 0.0
    %55 = vmatpush1.msra.mxu0 %v42
    %56 = vmatprep.subr.mxu0 0.0
    %57 = vmatpush1.msra.mxu0 0.0
    %58 = vmatprep.subr.mxu0 0.0
    %59 = vmatpush1.msra.mxu0 0.0
    %60 = vmatprep.subr.mxu0 0.0
    %61 = vmatpush1.msra.mxu0 0.0
    %62 = vmatprep.subr.mxu0 0.0
    %63 = vmatpush1.msra.mxu0 0.0
    %64 = vmatprep.subr.mxu0 0.0
    %65 = vmatpush1.msra.mxu0 0.0
    %66 = vmatprep.subr.mxu0 0.0
    %67 = vmatpush1.msra.mxu0 0.0
    %68 = vmatprep.subr.mxu0 0.0
    %69 = vmatpush1.msra.mxu0 0.0
    %70 = vmatprep.subr.mxu0 0.0
    %71 = vmatpush1.msra.mxu0 0.0
    %72 = vmatprep.subr.mxu0 0.0
    %73 = vmatpush1.msra.mxu0 0.0
    %74 = vmatprep.subr.mxu0 0.0
    %75 = vmatpush1.msra.mxu0 0.0
    %76 = vmatprep.subr.mxu0 0.0
    %77 = vmatpush1.msra.mxu0 0.0
    %78 = vmatprep.subr.mxu0 0.0
    %79 = vmatpush1.msra.mxu0 0.0
    %80 = vmatprep.subr.mxu0 0.0
    %81 = vmatpush1.msra.mxu0 0.0
    %82 = vmatprep.subr.mxu0 0.0
    %83 = vmatpush1.msra.mxu0 0.0
    %84 = vmatprep.subr.mxu0 0.0
    %85 = vmatpush1.msra.mxu0 0.0
    %86 = vmatprep.subr.mxu0 0.0
    %87 = vmatpush1.msra.mxu0 0.0
    %88 = vmatprep.subr.mxu0 0.0
    %89 = vmatpush1.msra.mxu0 0.0
    %90 = vmatprep.subr.mxu0 0.0
    %91 = vmatpush1.msra.mxu0 0.0
    %92 = vmatprep.subr.mxu0 0.0
    %93 = vmatpush1.msra.mxu0 0.0
    %94 = vmatprep.subr.mxu0 0.0
    %95 = vmatpush1.msra.mxu0 0.0
    %96 = vmatprep.subr.mxu0 0.0
    %97 = vmatpush1.msra.mxu0 0.0
    %98 = vmatprep.subr.mxu0 0.0
    %99 = vmatpush1.msra.mxu0 0.0
    %100 = vmatprep.subr.mxu0 0.0
    %101 = vmatpush1.msra.mxu0 0.0
    %102 = vmatprep.subr.mxu0 0.0
    %103 = vmatpush1.msra.mxu0 0.0
    %104 = vmatprep.subr.mxu0 0.0
    %105 = vmatpush1.msra.mxu0 0.0
    %106 = vmatprep.subr.mxu0 0.0
    %107 = vmatpush1.msra.mxu0 0.0
    %108 = vmatprep.subr.mxu0 0.0
    %109 = vmatpush1.msra.mxu0 0.0
    %110 = vmatprep.subr.mxu0 0.0
    %111 = vmatpush1.msra.mxu0 0.0
    %112 = vmatprep.subr.mxu0 0.0
    %113 = vmatpush1.msra.mxu0 0.0
    %114 = vmatprep.subr.mxu0 0.0
    %115 = vmatpush1.msra.mxu0 0.0
    %116 = vmatprep.subr.mxu0 0.0
    %117 = vmatpush1.msra.mxu0 0.0
    %118 = vmatprep.mubr.f32.mxu0 0.0
    %119 = vmatmul.mubr.f32.gmra.mrb[0].mxu0 %v52
    %v120 = vpop.f32.mrb[0].mxu0
    %v121 = vadd.f32 %v48, %v120
    %v122 = vpop.f32.mrb[0].mxu0
    %123 = vdwg.mxu0
    %v124 = vmax.f32 %v121, 0.0
    %v125 = vld [vmem:[%s3] sm:$0xff]
    %v126 = vld [vmem:[%s3 + $0x8] sm:$0xff]
    %v127 = vld [vmem:[%s3 + $0x10] sm:$0xff]
    %v128 = vld [vmem:[%s3 + $0x18] sm:$0xff]
    %v129 = vld [vmem:[%s3 + $0x20] sm:$0xff]
    %v130 = vld [vmem:[%s3 + $0x28] sm:$0xff]
    %v131 = vld [vmem:[%s3 + $0x30] sm:$0xff]
    %v132 = vld [vmem:[%s3 + $0x38] sm:$0xff]
    %v133 = vld [vmem:[%s3 + $0x40] sm:$0xff]
    %v134 = vld [vmem:[%s3 + $0x48] sm:$0xff]
    %v135 = vld [vmem:[%s3 + $0x50] sm:$0xff]
    %v136 = vld [vmem:[%s3 + $0x58] sm:$0xff]
    %v137 = vld [vmem:[%s3 + $0x60] sm:$0xff]
    %v138 = vld [vmem:[%s3 + $0x68] sm:$0xff]
    %v139 = vld [vmem:[%s3 + $0x70] sm:$0xff]
    %v140 = vld [vmem:[%s3 + $0x78] sm:$0xff]
    %v141 = vld [vmem:[%s4] sm:$0x1]
    %v143 = vlaneseq
    %v144 = vshrl.u32 %v143, 7
    %v145 = vsub.s32 0, %v144
    %v146 = vrot.slane %v141, %v145
    %148 = vmatprep.subr.mxu0 0.0
    %149 = vmatpush1.msra.mxu0 %v125
    %150 = vmatprep.subr.mxu0 0.0
    %151 = vmatpush1.msra.mxu0 %v126
    %152 = vmatprep.subr.mxu0 0.0
    %153 = vmatpush1.msra.mxu0 %v127
    %154 = vmatprep.subr.mxu0 0.0
    %155 = vmatpush1.msra.mxu0 %v128
    %156 = vmatprep.subr.mxu0 0.0
    %157 = vmatpush1.msra.mxu0 %v129
    %158 = vmatprep.subr.mxu0 0.0
    %159 = vmatpush1.msra.mxu0 %v130
    %160 = vmatprep.subr.mxu0 0.0
    %161 = vmatpush1.msra.mxu0 %v131
    %162 = vmatprep.subr.mxu0 0.0
    %163 = vmatpush1.msra.mxu0 %v132
    %164 = vmatprep.subr.mxu0 0.0
    %165 = vmatpush1.msra.mxu0 %v133
    %166 = vmatprep.subr.mxu0 0.0
    %167 = vmatpush1.msra.mxu0 %v134
    %168 = vmatprep.subr.mxu0 0.0
    %169 = vmatpush1.msra.mxu0 %v135
    %170 = vmatprep.subr.mxu0 0.0
    %171 = vmatpush1.msra.mxu0 %v136
    %172 = vmatprep.subr.mxu0 0.0
    %173 = vmatpush1.msra.mxu0 %v137
    %174 = vmatprep.subr.mxu0 0.0
    %175 = vmatpush1.msra.mxu0 %v138
    %176 = vmatprep.subr.mxu0 0.0
    %177 = vmatpush1.msra.mxu0 %v139
    %178 = vmatprep.subr.mxu0 0.0
    %179 = vmatpush1.msra.mxu0 %v140
    %180 = vmatprep.subr.mxu0 0.0
    %181 = vmatpush1.msra.mxu0 0.0
    %182 = vmatprep.subr.mxu0 0.0
    %183 = vmatpush1.msra.mxu0 0.0
    %184 = vmatprep.subr.mxu0 0.0
    %185 = vmatpush1.msra.mxu0 0.0
    %186 = vmatprep.subr.mxu0 0.0
    %187 = vmatpush1.msra.mxu0 0.0
    %188 = vmatprep.subr.mxu0 0.0
    %189 = vmatpush1.msra.mxu0 0.0
    %190 = vmatprep.subr.mxu0 0.0
    %191 = vmatpush1.msra.mxu0 0.0
    %192 = vmatprep.subr.mxu0 0.0
    %193 = vmatpush1.msra.mxu0 0.0
    %194 = vmatprep.subr.mxu0 0.0
    %195 = vmatpush1.msra.mxu0 0.0
    %196 = vmatprep.subr.mxu0 0.0
    %197 = vmatpush1.msra.mxu0 0.0
    %198 = vmatprep.subr.mxu0 0.0
    %199 = vmatpush1.msra.mxu0 0.0
    %200 = vmatprep.subr.mxu0 0.0
    %201 = vmatpush1.msra.mxu0 0.0
    %202 = vmatprep.subr.mxu0 0.0
    %203 = vmatpush1.msra.mxu0 0.0
    %204 = vmatprep.subr.mxu0 0.0
    %205 = vmatpush1.msra.mxu0 0.0
    %206 = vmatprep.subr.mxu0 0.0
    %207 = vmatpush1.msra.mxu0 0.0
    %208 = vmatprep.subr.mxu0 0.0
    %209 = vmatpush1.msra.mxu0 0.0
    %210 = vmatprep.subr.mxu0 0.0
    %211 = vmatpush1.msra.mxu0 0.0
    %212 = vmatprep.mubr.f32.mxu0 0.0
    %213 = vmatmul.mubr.f32.gmra.mrb[0].mxu0 %v124
    %v214 = vpop.f32.mrb[0].mxu0
    %v215 = vadd.f32 %v146, %v214
    %v216 = vpop.f32.mrb[0].mxu0
    %217 = vdwg.mxu0
    %v218 = vld [vmem:[%s5] sm:$0xff]
    %v219 = vld [vmem:[%s5 + $0x8] sm:$0xff]
    %v220 = vld [vmem:[%s5 + $0x10] sm:$0xff]
    %v221 = vld [vmem:[%s5 + $0x18] sm:$0xff]
    %v222 = vld [vmem:[%s5 + $0x20] sm:$0xff]
    %v223 = vld [vmem:[%s5 + $0x28] sm:$0xff]
    %v224 = vld [vmem:[%s5 + $0x30] sm:$0xff]
    %v225 = vld [vmem:[%s5 + $0x38] sm:$0xff]
    %v226 = vld [vmem:[%s5 + $0x40] sm:$0xff]
    %v227 = vld [vmem:[%s5 + $0x48] sm:$0xff]
    %v228 = vld [vmem:[%s5 + $0x50] sm:$0xff]
    %v229 = vld [vmem:[%s5 + $0x58] sm:$0xff]
    %v230 = vld [vmem:[%s5 + $0x60] sm:$0xff]
    %v231 = vld [vmem:[%s5 + $0x68] sm:$0xff]
    %v232 = vld [vmem:[%s5 + $0x70] sm:$0xff]
    %v233 = vld [vmem:[%s5 + $0x78] sm:$0xff]
    %v234 = vld [vmem:[#allocation2] sm:$0x1]
    %v236 = vlaneseq
    %v237 = vshrl.u32 %v236, 7
    %v238 = vsub.s32 0, %v237
    %v239 = vrot.slane %v234, %v238
    %241 = vmatprep.subr.mxu0 0.0
    %242 = vmatpush1.msra.mxu0 %v218
    %243 = vmatprep.subr.mxu0 0.0
    %244 = vmatpush1.msra.mxu0 %v219
    %245 = vmatprep.subr.mxu0 0.0
    %246 = vmatpush1.msra.mxu0 %v220
    %247 = vmatprep.subr.mxu0 0.0
    %248 = vmatpush1.msra.mxu0 %v221
    %249 = vmatprep.subr.mxu0 0.0
    %250 = vmatpush1.msra.mxu0 %v222
    %251 = vmatprep.subr.mxu0 0.0
    %252 = vmatpush1.msra.mxu0 %v223
    %253 = vmatprep.subr.mxu0 0.0
    %254 = vmatpush1.msra.mxu0 %v224
    %255 = vmatprep.subr.mxu0 0.0
    %256 = vmatpush1.msra.mxu0 %v225
    %257 = vmatprep.subr.mxu0 0.0
    %258 = vmatpush1.msra.mxu0 %v226
    %259 = vmatprep.subr.mxu0 0.0
    %260 = vmatpush1.msra.mxu0 %v227
    %261 = vmatprep.subr.mxu0 0.0
    %262 = vmatpush1.msra.mxu0 %v228
    %263 = vmatprep.subr.mxu0 0.0
    %264 = vmatpush1.msra.mxu0 %v229
    %265 = vmatprep.subr.mxu0 0.0
    %266 = vmatpush1.msra.mxu0 %v230
    %267 = vmatprep.subr.mxu0 0.0
    %268 = vmatpush1.msra.mxu0 %v231
    %269 = vmatprep.subr.mxu0 0.0
    %270 = vmatpush1.msra.mxu0 %v232
    %271 = vmatprep.subr.mxu0 0.0
    %272 = vmatpush1.msra.mxu0 %v233
    %273 = vmatprep.subr.mxu0 0.0
    %274 = vmatpush1.msra.mxu0 0.0
    %275 = vmatprep.subr.mxu0 0.0
    %276 = vmatpush1.msra.mxu0 0.0
    %277 = vmatprep.subr.mxu0 0.0
    %278 = vmatpush1.msra.mxu0 0.0
    %279 = vmatprep.subr.mxu0 0.0
    %280 = vmatpush1.msra.mxu0 0.0
    %281 = vmatprep.subr.mxu0 0.0
    %282 = vmatpush1.msra.mxu0 0.0
    %283 = vmatprep.subr.mxu0 0.0
    %284 = vmatpush1.msra.mxu0 0.0
    %285 = vmatprep.subr.mxu0 0.0
    %286 = vmatpush1.msra.mxu0 0.0
    %287 = vmatprep.subr.mxu0 0.0
    %288 = vmatpush1.msra.mxu0 0.0
    %289 = vmatprep.subr.mxu0 0.0
    %290 = vmatpush1.msra.mxu0 0.0
    %291 = vmatprep.subr.mxu0 0.0
    %292 = vmatpush1.msra.mxu0 0.0
    %293 = vmatprep.subr.mxu0 0.0
    %294 = vmatpush1.msra.mxu0 0.0
    %295 = vmatprep.subr.mxu0 0.0
    %296 = vmatpush1.msra.mxu0 0.0
    %297 = vmatprep.subr.mxu0 0.0
    %298 = vmatpush1.msra.mxu0 0.0
    %299 = vmatprep.subr.mxu0 0.0
    %300 = vmatpush1.msra.mxu0 0.0
    %301 = vmatprep.subr.mxu0 0.0
    %302 = vmatpush1.msra.mxu0 0.0
    %303 = vmatprep.subr.mxu0 0.0
    %304 = vmatpush1.msra.mxu0 0.0
    %305 = vmatprep.mubr.f32.mxu0 0.0
    %306 = vmatmul.mubr.f32.gmra.mrb[0].mxu0 %v124
    %v307 = vpop.f32.mrb[0].mxu0
    %v308 = vadd.f32 %v239, %v307
    %v309 = vpop.f32.mrb[0].mxu0
    %310 = vdwg.mxu0
    %312 = vset.pattern.permute.xlu0 0
    %313 = vperm.xlu0 %312, %v308
    %v314 = vpop.permute.xlu0 %313
    %v316 = vadd.f32 %v215, %v314
    %317 = vst [vmem:[#allocation6] sm:$0xff] %v316
    // Predicated region
    $region34: #{tpu_custom_call.1} parent=1 // pred_check
      _
    $region35: #{tpu_custom_call.1} parent=1 // pred_check_branch
      %319 = sbr.rel (0) target = $region37
    $region36: #{tpu_custom_call.1} parent=1 // pred_region
      %s321 = ssub.s32 128, 128
      %322 = vsyncadd [#allocation5], %s321
      %s324 = sshll.u32 [#allocation6], 4
      %s325 = int_to_ptr.vmem [resolvable:$true] %s324
      %327 = dma.vmem_to_hbm [thread:$0]  %s325, 128, %s7, [#allocation5]
    $region37: #{tpu_custom_call.1} parent=1 // pred_fallthru
      _
    // Predicated region
    $region38: #{tpu_custom_call.1} parent=1 // pred_check
      _
    $region39: #{tpu_custom_call.1} parent=1 // pred_check_branch
      %329 = sbr.rel (0) target = $region41
    $region40: #{tpu_custom_call.1} parent=1 // pred_region
      %330 = dma.done [#allocation5], 128
    $region41: #{tpu_custom_call.1} parent=1 // pred_fallthru
      _
    %331 = vsyncpa [#allocation4], 1
    %332 = vsyncpa [#allocation5], 1

</llo_original>
